<compile_context>
chip_gen: v7x
topology: tpu7x:2x2x1
jax: 0.10.0
libtpu: 0.0.40
codegen_flags: <defaults>
</compile_context>

<pallas_src>
import jax
import jax.numpy as jnp
from jax.experimental import pallas as pl
from jax.experimental.pallas import tpu as pltpu

B, IN, OUT = 1, 1, 8  # shapes implied by the module: x1 = randn(1, 1), Linear(1, 8)


def affine_kernel(x_ref, wb_ref, o_ref):
    # x_ref : (1, 1)  f32 in SMEM  -> scalar read, no vector DMA / masked load
    # wb_ref: (2, OUT) f32 in VMEM, row 0 = W[:, 0], row 1 = bias
    # o_ref : (1, OUT) f32 in VMEM
    x = x_ref[0, 0]
    # Same op order as the reference ((x*w + b) + 2.0) -> bit-identical result.
    o_ref[...] = x * wb_ref[0:1, :] + wb_ref[1:2, :] + jnp.float32(2.0)


def pack_params(w, b):
    """Pack torch-layout (OUT, IN) weight and (OUT,) bias into one (2, OUT) buffer.

    Called ONCE at parameter-load time (not per forward call), so the per-call
    path is just the jitted pallas_call with a single small param DMA.
    """
    assert w.shape == (OUT, IN) and IN == 1, "kernel hard-codes Linear(1, 8)"
    assert b.shape == (OUT,)
    return jnp.stack([w[:, 0], b], axis=0).astype(jnp.float32)  # (2, OUT)


@jax.jit
def model_forward(x, wb):
    """Computes Linear(x) * 1.0 + 2.0.  The *1.0 is a no-op and is dropped.

    x : (B, IN) f32 input; wb: (2, OUT) f32 packed params from pack_params().
    """
    return pl.pallas_call(
        affine_kernel,
        out_shape=jax.ShapeDtypeStruct((B, OUT), jnp.float32),
        in_specs=[
            pl.BlockSpec(memory_space=pltpu.MemorySpace.SMEM),  # 4-byte scalar input
            pl.BlockSpec(memory_space=pltpu.MemorySpace.VMEM),  # single packed param DMA
        ],
        out_specs=pl.BlockSpec(memory_space=pltpu.MemorySpace.VMEM),
        cost_estimate=pl.CostEstimate(
            flops=2 * B * OUT,                                   # 16 FLOPs
            transcendentals=0,
            bytes_accessed=(B * IN + 2 * OUT + B * OUT) * 4,     # ~100 bytes
        ),
    )(x, wb)
    # TODO(synk): if this affine ever sits inside a larger model, fuse it into
    # the adjacent kernel (or plain jnp) instead of paying a standalone launch.


if __name__ == "__main__":
    key = jax.random.PRNGKey(0)
    kx, kw, kb = jax.random.split(key, 3)

    # Input matching torch.randn(1, 1)
    x = jax.random.normal(kx, (B, IN), dtype=jnp.float32)

    # Deterministic Linear(1, 8) params (torch default init: U(-1/sqrt(IN), 1/sqrt(IN)))
    bound = 1.0 / (IN ** 0.5)
    w = jax.random.uniform(kw, (OUT, IN), dtype=jnp.float32, minval=-bound, maxval=bound)
    b = jax.random.uniform(kb, (OUT,), dtype=jnp.float32, minval=-bound, maxval=bound)

    # One-time parameter packing (hoisted out of the per-call path).
    wb = jax.block_until_ready(pack_params(w, b))

    out = jax.block_until_ready(model_forward(x, wb))

    # Reference check in plain JAX (exact original semantics)
    ref = (x @ w.T + b) * jnp.float32(1.0) + jnp.float32(2.0)
    assert out.shape == (B, OUT)
    assert jnp.allclose(out, ref, atol=1e-6, rtol=1e-6)

    print("KERNEL_OK")
</pallas_src>

<mosaic_0001>
module attributes {stable_mosaic.version = 11 : i64} {
  func.func @affine_kernel(%arg0: memref<1x1xf32, #tpu.memory_space<smem>>, %arg1: memref<2x8xf32, #tpu.memory_space<vmem>>, %arg2: memref<1x8xf32, #tpu.memory_space<vmem>>) attributes {dimension_semantics = [], scalar_prefetch = 0 : i64, scratch_operands = 0 : i64, tpu.core_type = #tpu.core_type<tc>} {
    %c0 = arith.constant 0 : index
    %c0_0 = arith.constant 0 : index
    %0 = memref.load %arg0[%c0, %c0_0] : memref<1x1xf32, #tpu.memory_space<smem>>
    %c0_1 = arith.constant 0 : index
    %c0_2 = arith.constant 0 : index
    %1 = vector.load %arg1[%c0_1, %c0_2] : memref<2x8xf32, #tpu.memory_space<vmem>>, vector<1x8xf32>
    %2 = vector.broadcast %0 : f32 to vector<1x8xf32>
    %3 = arith.mulf %2, %1 : vector<1x8xf32>
    %c1 = arith.constant 1 : index
    %c0_3 = arith.constant 0 : index
    %4 = vector.load %arg1[%c1, %c0_3] : memref<2x8xf32, #tpu.memory_space<vmem>>, vector<1x8xf32>
    %5 = arith.addf %3, %4 : vector<1x8xf32>
    %cst = arith.constant 2.000000e+00 : f32
    %6 = vector.broadcast %cst : f32 to vector<1x8xf32>
    %7 = arith.addf %5, %6 : vector<1x8xf32>
    %c0_4 = arith.constant 0 : index
    %c0_5 = arith.constant 0 : index
    %8 = vector.load %arg2[%c0_4, %c0_5] : memref<1x8xf32, #tpu.memory_space<vmem>>, vector<1x8xf32>
    tpu.vector_store %arg2[%c0_4, %c0_5], %7 {strides = array<i32>} : memref<1x8xf32, #tpu.memory_space<vmem>>, vector<1x8xf32>,
    return
  }
}

</mosaic_0001>

<llo_original>
// kernel: model_forward.1
$region0: #{model_forward.1}
  #allocation0 [shape = 'u32[]', space=smem, size = 0x4, offset = 0x4, fixed_abs, tag = 'smem constant byte address 0x4 - core index']
  #allocation1 [shape = 'u32[144,128]{1,0:T(1,128)}', space=vmem, size = 0x12000, scoped, tag = 'internal scratch']
  #allocation2 [shape = 'f32[1,1]{1,0:T(1,128)S(6)}', space=smem, size = 0x200, scoped, tag = 'scoped memory for model_forward.1']
  %s0 = inlined_call_operand.<no memory space> [shape: f32[1,1], index: 0, kind: input, shape index: {}]
  %s1 = inlined_call_operand.vmem [shape: f32[2,8], index: 1, kind: input, shape index: {}]
  %s2 = inlined_call_operand.hbm [shape: f32[1,8], index: 2, kind: output, shape index: {}]
  %s3 = sld [smem:[#allocation0]]
  $region18: #{model_forward.1} parent=0
    _
  %s5 = ssub.s32 1, %s3
  %s6 = scalar_select 0, %s5, %s3
  %7 = sst [smem:[#allocation2]] %s0
  $region1: #{model_forward.1} parent=0
    #allocation3 [shape = 'u8[512]{0}', space=vmem, size = 0x400, scoped, tag = 'output window, operand 0, single buffered']
    #allocation4 [shape = 's32[1]{0}', space=sflag, size = 0x4, scoped, tag = 'scoped memory for model_forward.1']
    %8 = vsyncpa [#allocation4], 0
    // Predicated region
    $region2: #{model_forward.1} parent=1 // pred_check
      _
    $region3: #{model_forward.1} parent=1 // pred_check_branch
      %10 = sbr.rel (0) target = $region5
    $region4: #{model_forward.1} parent=1 // pred_region
      _
    $region5: #{model_forward.1} parent=1 // pred_fallthru
      _
    // Predicated region
    $region6: #{model_forward.1} parent=1 // pred_check
      _
    $region7: #{model_forward.1} parent=1 // pred_check_branch
      %12 = sbr.rel (0) target = $region9
    $region8: #{model_forward.1} parent=1 // pred_region
      _
    $region9: #{model_forward.1} parent=1 // pred_fallthru
      _
    %s13 = sld [smem:[#allocation2]]
    %v14 = vld [vmem:[%s1] sm:$0x1]
    %v15 = vstv %s13
    %v16 = vmul.f32 %v15, %v14
    %v17 = vld [vmem:[%s1 + $0x1] sm:$0x1]
    %v18 = vadd.f32 %v16, %v17
    %v19 = vadd.f32 %v18, 2.0
    %vm20 = vcmask 57344
    %21 = vst.msk [vmem:[#allocation3] sm:$0x1] %vm20, %v19
    // Predicated region
    $region10: #{model_forward.1} parent=1 // pred_check
      _
    $region11: #{model_forward.1} parent=1 // pred_check_branch
      %23 = sbr.rel (0) target = $region13
    $region12: #{model_forward.1} parent=1 // pred_region
      %s25 = ssub.s32 16, 16
      %26 = vsyncadd [#allocation4], %s25
      %s28 = sshll.u32 [#allocation3], 4
      %s29 = int_to_ptr.vmem [resolvable:$true] %s28
      %31 = dma.vmem_to_hbm [thread:$0]  %s29, 16, %s2, [#allocation4]
    $region13: #{model_forward.1} parent=1 // pred_fallthru
      _
    // Predicated region
    $region14: #{model_forward.1} parent=1 // pred_check
      _
    $region15: #{model_forward.1} parent=1 // pred_check_branch
      %33 = sbr.rel (0) target = $region17
    $region16: #{model_forward.1} parent=1 // pred_region
      %34 = dma.done [#allocation4], 16
    $region17: #{model_forward.1} parent=1 // pred_fallthru
      _
    %35 = vsyncpa [#allocation4], 1

</llo_original>
